<compile_context>
chip_gen: v7x
topology: tpu7x:2x2x1
jax: 0.10.0
libtpu: 0.0.40
codegen_flags: <defaults>
</compile_context>

<pallas_src>
import jax
import jax.numpy as jnp
from jax.experimental import pallas as pl
from jax.experimental.pallas import tpu as pltpu


def _round_up(n: int, m: int) -> int:
    return (n + m - 1) // m * m


def _chip_config():
    """Returns (vmem tile budget, vmem_limit_bytes, has_two_tensorcores)."""
    try:
        kind = jax.devices()[0].device_kind.lower()
    except Exception:
        kind = ""
    two_cores = any(t in kind for t in ("v4", "v5p", "v7", "tpu7"))
    if "v7" in kind or "tpu7" in kind:
        # v7x: only 64 MiB VMEM per TensorCore — stay well under it.
        return 32 * 2**20, 48 * 2**20, two_cores
    if "v6" in kind or "v5e" in kind or "v5 lite" in kind or "v5lite" in kind:
        # v5e / v6e: 128 MiB physical VMEM.
        return 48 * 2**20, 64 * 2**20, two_cores
    # Unknown / older generations: conservative.
    return 24 * 2**20, 32 * 2**20, two_cores


def _proj_bias_kernel(x_ref, w_ref, b_ref, o_ref):
    # Pool already folded into w: one MXU matmul + bias, f32 accumulation.
    o_ref[...] = (
        jnp.dot(x_ref[...], w_ref[...], preferred_element_type=jnp.float32)
        + b_ref[...]
    ).astype(o_ref.dtype)


def _make_pool_proj_bias_kernel(factor: int, c_in: int):
    # Lane-aligned in-kernel mean pooling (VPU adds) + one MXU matmul + bias.
    def kernel(x_ref, w_ref, b_ref, o_ref):
        pooled = x_ref[:, 0:c_in].astype(jnp.float32)
        for g in range(1, factor):
            pooled = pooled + x_ref[:, g * c_in:(g + 1) * c_in].astype(jnp.float32)
        pooled = (pooled * (1.0 / factor)).astype(x_ref.dtype)
        o_ref[...] = (
            jnp.dot(pooled, w_ref[...], preferred_element_type=jnp.float32)
            + b_ref[...]
        ).astype(o_ref.dtype)
    return kernel


def base_down_sampling(x, w, b, *, down_sampling_factor=2, max_tile_m=1024):
    """x: [B, L, C_in] -> [B, L // factor, C_out].

    Mean-pools the sequence axis by `down_sampling_factor`, then applies a
    linear projection C_in -> C_out (bias included).
    """
    B, L, C_in = x.shape
    f = int(down_sampling_factor)
    assert L % f == 0, "sequence length must be divisible by down_sampling_factor"
    # TODO(synk): no padding/truncation path for L % f != 0 (matches assert-only spec).
    L_out = L // f
    C_out = w.shape[-1]
    M = B * L_out

    dtype = x.dtype
    itemsize = jnp.dtype(dtype).itemsize
    budget, vmem_limit, two_cores = _chip_config()

    # --- flatten; choose fold-into-weights vs in-kernel pooling ---------------
    x2 = x.reshape(M, f * C_in)                     # contiguous reshape, no HBM copy
    Kx = f * C_in
    pool_in_kernel = (f > 1) and (C_in % 128 == 0) and (C_in >= 256)
    if pool_in_kernel:
        w2 = jnp.asarray(w, dtype)                  # (C_in, C_out), native dtype
        Kw = C_in
        kernel = _make_pool_proj_bias_kernel(f, C_in)
    else:
        w2 = (jnp.tile(jnp.asarray(w, jnp.float32), (f, 1)) / f).astype(dtype)
        Kw = f * C_in                               # (f*C_in, C_out)
        kernel = _proj_bias_kernel
    b2 = jnp.asarray(b, jnp.float32).reshape(1, C_out)

    # --- N tiling: avoid wrapper-side pad/slice whenever possible -------------
    w_bytes_full = 2 * Kw * C_out * itemsize        # double-buffered resident weight
    if C_out % 128 == 0:
        tn_cap = (budget // 3) // max(1, 2 * Kw * itemsize)
        tn_cap = max(128, (tn_cap // 128) * 128)
        TN = min(C_out, tn_cap, 2048)
        N_k = C_out
        n_slice = False
    elif w_bytes_full <= budget // 2:
        TN = C_out                                  # full-N block (masked stores, no round trip)
        N_k = C_out
        n_slice = False
    else:
        # Rare fallback: unaligned C_out with a huge weight — pad to 128 lanes
        # and tile N; pays one output slice in the wrapper.
        N_k = _round_up(C_out, 128)
        tn_cap = max(128, ((budget // 3) // max(1, 2 * Kw * itemsize)) // 128 * 128)
        TN = min(N_k, tn_cap, 2048)
        w2 = jnp.pad(w2, ((0, 0), (0, N_k - C_out)))
        b2 = jnp.pad(b2, ((0, 0), (0, N_k - C_out)))
        n_slice = True

    # --- M tiling against the per-chip VMEM budget -----------------------------
    fixed = 2 * Kw * TN * itemsize + 2 * TN * 4 + 2 * 2**20   # dbl-buffered w + b + headroom
    per_row = 2 * Kx * itemsize + 2 * TN * itemsize           # dbl-buffered x tile + out tile
    tm_cap = max(8, (budget - fixed) // per_row)
    TM = max(8, min(max_tile_m, tm_cap, _round_up(M, 8)) // 8 * 8)

    nm = pl.cdiv(M, TM)
    nn = pl.cdiv(N_k, TN)
    # Megacore / v7x: make sure the parallel grid has at least 2 steps to shard.
    if two_cores and nm * nn == 1 and M > 8:
        TM = max(8, _round_up(pl.cdiv(M, 2), 8))
        nm = pl.cdiv(M, TM)

    cost = pl.CostEstimate(
        flops=2 * M * Kw * N_k,
        transcendentals=0,
        bytes_accessed=(M * Kx + Kw * N_k + M * N_k) * itemsize + N_k * 4,
    )

    out = pl.pallas_call(
        kernel,
        out_shape=jax.ShapeDtypeStruct((M, N_k), dtype),
        grid_spec=pltpu.PrefetchScalarGridSpec(
            num_scalar_prefetch=0,
            grid=(nm, nn),
            in_specs=[
                # one M-tile of the flattened input per i step (reused across j)
                pl.BlockSpec((TM, Kx), lambda i, j: (i, 0)),
                # weight / bias N-tiles, resident across the M axis
                pl.BlockSpec((Kw, TN), lambda i, j: (0, j)),
                pl.BlockSpec((1, TN), lambda i, j: (0, j)),
            ],
            out_specs=pl.BlockSpec((TM, TN), lambda i, j: (i, j)),
        ),
        compiler_params=pltpu.CompilerParams(
            dimension_semantics=("parallel", "parallel"),
            vmem_limit_bytes=vmem_limit,
        ),
        cost_estimate=cost,
    )(x2, w2, b2)

    if n_slice:
        out = out[:, :C_out]
    return out.reshape(B, L_out, C_out)


def reference_down_sampling(x, w, b, *, down_sampling_factor=2):
    B, L, C = x.shape
    pooled = x.reshape(B, L // down_sampling_factor, down_sampling_factor, C).mean(axis=2)
    return (pooled.astype(jnp.float32) @ w.astype(jnp.float32)
            + jnp.asarray(b, jnp.float32).reshape(1, -1)).astype(x.dtype)


if __name__ == "__main__":
    key = jax.random.PRNGKey(0)
    kx, kw, kb, kx2, kw2, kb2 = jax.random.split(key, 6)

    # --- case 1: small channels -> pooling folded into the projection weights -
    B, L, C_in, C_out, f = 2, 16, 4, 8, 2
    x = jax.random.normal(kx, (B, L, C_in), dtype=jnp.float32)
    w = jax.random.normal(kw, (C_in, C_out), dtype=jnp.float32) * 0.02
    b = jax.random.normal(kb, (1, C_out), dtype=jnp.float32) * 0.02
    out = jax.block_until_ready(base_down_sampling(x, w, b, down_sampling_factor=f))
    ref = reference_down_sampling(x, w, b, down_sampling_factor=f)
    assert out.shape == (B, L // f, C_out), out.shape
    assert jnp.allclose(out, ref, atol=1e-5, rtol=1e-5), "fold-path mismatch vs reference"

    # --- case 2: lane-aligned channels -> pooling stays inside the kernel -----
    B2, L2, C_in2, C_out2 = 2, 8, 256, 128
    xa = jax.random.normal(kx2, (B2, L2, C_in2), dtype=jnp.float32)
    wa = jax.random.normal(kw2, (C_in2, C_out2), dtype=jnp.float32) * 0.02
    ba = jax.random.normal(kb2, (1, C_out2), dtype=jnp.float32) * 0.02
    out2 = jax.block_until_ready(base_down_sampling(xa, wa, ba, down_sampling_factor=f))
    ref2 = reference_down_sampling(xa, wa, ba, down_sampling_factor=f)
    assert out2.shape == (B2, L2 // f, C_out2), out2.shape
    assert jnp.allclose(out2, ref2, atol=5e-4, rtol=5e-4), "in-kernel-pool mismatch vs reference"

    print("KERNEL_OK")
</pallas_src>

<mosaic_0001>
module attributes {stable_mosaic.version = 11 : i64} {
  func.func @_proj_bias_kernel(%arg0: i32, %arg1: i32, %arg2: memref<16x8xf32, #tpu.memory_space<vmem>>, %arg3: memref<8x8xf32, #tpu.memory_space<vmem>>, %arg4: memref<1x8xf32, #tpu.memory_space<vmem>>, %arg5: memref<16x8xf32, #tpu.memory_space<vmem>>) attributes {dimension_semantics = [#tpu.dimension_semantics<parallel>, #tpu.dimension_semantics<parallel>], iteration_bounds = array<i64: 1, 1>, scalar_prefetch = 0 : i64, scratch_operands = 0 : i64, tpu.core_type = #tpu.core_type<tc>, window_params = [{transform_indices = @transform_0, window_bounds = array<i64: 16, 8>}, {transform_indices = @transform_1, window_bounds = array<i64: 8, 8>}, {transform_indices = @transform_2, window_bounds = array<i64: 1, 8>}, {transform_indices = @transform_3, window_bounds = array<i64: 16, 8>}]} {
    %c0 = arith.constant 0 : index
    %c0_0 = arith.constant 0 : index
    %0 = vector.load %arg2[%c0, %c0_0] : memref<16x8xf32, #tpu.memory_space<vmem>>, vector<16x8xf32>
    %c0_1 = arith.constant 0 : index
    %c0_2 = arith.constant 0 : index
    %1 = vector.load %arg3[%c0_1, %c0_2] : memref<8x8xf32, #tpu.memory_space<vmem>>, vector<8x8xf32>
    %cst = arith.constant dense<0.000000e+00> : vector<16x8xf32>
    %2 = tpu.matmul %0, %1, %cst {dimension_numbers = #tpu.dot_dimension_numbers<[1], [0], [0], [1], [0, 0, 1, 1], [], []>} : vector<16x8xf32>, vector<8x8xf32>, vector<16x8xf32> -> vector<16x8xf32>
    %c0_3 = arith.constant 0 : index
    %c0_4 = arith.constant 0 : index
    %3 = vector.load %arg4[%c0_3, %c0_4] : memref<1x8xf32, #tpu.memory_space<vmem>>, vector<1x8xf32>
    %4 = vector.broadcast %3 : vector<1x8xf32> to vector<16x8xf32>
    %5 = arith.addf %2, %4 : vector<16x8xf32>
    %c0_5 = arith.constant 0 : index
    %c0_6 = arith.constant 0 : index
    %6 = vector.load %arg5[%c0_5, %c0_6] : memref<16x8xf32, #tpu.memory_space<vmem>>, vector<16x8xf32>
    tpu.vector_store %arg5[%c0_5, %c0_6], %5 {strides = array<i32>} : memref<16x8xf32, #tpu.memory_space<vmem>>, vector<16x8xf32>,
    return
  }
  func.func @transform_0(%arg0: i32, %arg1: i32) -> (i32, i32) {
    %c0_i32 = arith.constant 0 : i32
    %c0_i32_0 = arith.constant 0 : i32
    return %arg0, %c0_i32 : i32, i32
  }
  func.func @transform_1(%arg0: i32, %arg1: i32) -> (i32, i32) {
    %c0_i32 = arith.constant 0 : i32
    %c0_i32_0 = arith.constant 0 : i32
    return %c0_i32, %arg1 : i32, i32
  }
  func.func @transform_2(%arg0: i32, %arg1: i32) -> (i32, i32) {
    %c0_i32 = arith.constant 0 : i32
    %c0_i32_0 = arith.constant 0 : i32
    return %c0_i32, %arg1 : i32, i32
  }
  func.func @transform_3(%arg0: i32, %arg1: i32) -> (i32, i32) {
    %c0_i32 = arith.constant 0 : i32
    return %arg0, %arg1 : i32, i32
  }
}

</mosaic_0001>

<llo_original>
// kernel: tpu_custom_call.1
$region0: #{tpu_custom_call.1}
  #allocation0 [shape = 'u32[]', space=smem, size = 0x4, offset = 0x4, fixed_abs, tag = 'smem constant byte address 0x4 - core index']
  #allocation1 [shape = 'u32[144,128]{1,0:T(1,128)}', space=vmem, size = 0x12000, scoped, tag = 'internal scratch']
  %s0 = inlined_call_operand.vmem [shape: f32[16,8], index: 0, kind: input, shape index: {}]
  %s1 = inlined_call_operand.vmem [shape: f32[8,8], index: 1, kind: input, shape index: {}]
  %s2 = inlined_call_operand.vmem [shape: f32[1,8], index: 2, kind: input, shape index: {}]
  %s3 = inlined_call_operand.vmem [shape: f32[16,8], index: 3, kind: output, shape index: {}]
  %s4 = sld [smem:[#allocation0]]
  $region22: #{tpu_custom_call.1} parent=0
    _
  %s6 = ssub.s32 1, %s4
  %s7 = scalar_select 0, %s6, %s4
  // Predicated region
  $region2: #{tpu_custom_call.1} parent=0 // pred_check
    _
  $region3: #{tpu_custom_call.1} parent=0 // pred_check_branch
    %9 = sbr.rel (0) target = $region5
  $region4: #{tpu_custom_call.1} parent=0 // pred_region
    _
  $region5: #{tpu_custom_call.1} parent=0 // pred_fallthru
    _
  // Predicated region
  $region6: #{tpu_custom_call.1} parent=0 // pred_check
    _
  $region7: #{tpu_custom_call.1} parent=0 // pred_check_branch
    %11 = sbr.rel (0) target = $region9
  $region8: #{tpu_custom_call.1} parent=0 // pred_region
    _
  $region9: #{tpu_custom_call.1} parent=0 // pred_fallthru
    _
  // Predicated region
  $region10: #{tpu_custom_call.1} parent=0 // pred_check
    _
  $region11: #{tpu_custom_call.1} parent=0 // pred_check_branch
    %13 = sbr.rel (0) target = $region13
  $region12: #{tpu_custom_call.1} parent=0 // pred_region
    _
  $region13: #{tpu_custom_call.1} parent=0 // pred_fallthru
    _
  %v14 = vld [vmem:[%s0] sm:$0xff]
  %v15 = vld [vmem:[%s0 + $0x8] sm:$0xff]
  %v16 = vld [vmem:[%s1] sm:$0xff]
  %v17 = vld [vmem:[%s2] sm:$0x1]
  %v19 = vlaneseq
  %v20 = vshrl.u32 %v19, 7
  %v21 = vsub.s32 0, %v20
  %v22 = vrot.slane %v17, %v21
  %vm24 = vcmask 64512
  %v26 = vsel %vm24, %v14, 0
  %v29 = vsel %vm24, %v15, 0
  %31 = vmatprep.subr.mxu0 0.0
  %32 = vmatpush1.msra.mxu0 %v16
  %33 = vmatprep.subr.mxu0 0.0
  %34 = vmatpush1.msra.mxu0 0.0
  %35 = vmatprep.subr.mxu0 0.0
  %36 = vmatpush1.msra.mxu0 0.0
  %37 = vmatprep.subr.mxu0 0.0
  %38 = vmatpush1.msra.mxu0 0.0
  %39 = vmatprep.subr.mxu0 0.0
  %40 = vmatpush1.msra.mxu0 0.0
  %41 = vmatprep.subr.mxu0 0.0
  %42 = vmatpush1.msra.mxu0 0.0
  %43 = vmatprep.subr.mxu0 0.0
  %44 = vmatpush1.msra.mxu0 0.0
  %45 = vmatprep.subr.mxu0 0.0
  %46 = vmatpush1.msra.mxu0 0.0
  %47 = vmatprep.subr.mxu0 0.0
  %48 = vmatpush1.msra.mxu0 0.0
  %49 = vmatprep.subr.mxu0 0.0
  %50 = vmatpush1.msra.mxu0 0.0
  %51 = vmatprep.subr.mxu0 0.0
  %52 = vmatpush1.msra.mxu0 0.0
  %53 = vmatprep.subr.mxu0 0.0
  %54 = vmatpush1.msra.mxu0 0.0
  %55 = vmatprep.subr.mxu0 0.0
  %56 = vmatpush1.msra.mxu0 0.0
  %57 = vmatprep.subr.mxu0 0.0
  %58 = vmatpush1.msra.mxu0 0.0
  %59 = vmatprep.subr.mxu0 0.0
  %60 = vmatpush1.msra.mxu0 0.0
  %61 = vmatprep.subr.mxu0 0.0
  %62 = vmatpush1.msra.mxu0 0.0
  %63 = vmatprep.subr.mxu0 0.0
  %64 = vmatpush1.msra.mxu0 0.0
  %65 = vmatprep.subr.mxu0 0.0
  %66 = vmatpush1.msra.mxu0 0.0
  %67 = vmatprep.subr.mxu0 0.0
  %68 = vmatpush1.msra.mxu0 0.0
  %69 = vmatprep.subr.mxu0 0.0
  %70 = vmatpush1.msra.mxu0 0.0
  %71 = vmatprep.subr.mxu0 0.0
  %72 = vmatpush1.msra.mxu0 0.0
  %73 = vmatprep.subr.mxu0 0.0
  %74 = vmatpush1.msra.mxu0 0.0
  %75 = vmatprep.subr.mxu0 0.0
  %76 = vmatpush1.msra.mxu0 0.0
  %77 = vmatprep.subr.mxu0 0.0
  %78 = vmatpush1.msra.mxu0 0.0
  %79 = vmatprep.subr.mxu0 0.0
  %80 = vmatpush1.msra.mxu0 0.0
  %81 = vmatprep.subr.mxu0 0.0
  %82 = vmatpush1.msra.mxu0 0.0
  %83 = vmatprep.subr.mxu0 0.0
  %84 = vmatpush1.msra.mxu0 0.0
  %85 = vmatprep.subr.mxu0 0.0
  %86 = vmatpush1.msra.mxu0 0.0
  %87 = vmatprep.subr.mxu0 0.0
  %88 = vmatpush1.msra.mxu0 0.0
  %89 = vmatprep.subr.mxu0 0.0
  %90 = vmatpush1.msra.mxu0 0.0
  %91 = vmatprep.subr.mxu0 0.0
  %92 = vmatpush1.msra.mxu0 0.0
  %93 = vmatprep.subr.mxu0 0.0
  %94 = vmatpush1.msra.mxu0 0.0
  %95 = vmatprep.mubr.f32.mxu0 0.0
  %96 = vmatmul.mubr.f32.gmra.mrb[0].mxu0 %v26
  %v97 = vpop.f32.mrb[0].mxu0
  %v98 = vadd.f32 %v22, %v97
  %v99 = vpop.f32.mrb[0].mxu0
  %100 = vmatprep.mubr.f32.mxu0 0.0
  %101 = vmatmul.mubr.f32.gmra.mrb[0].mxu0 %v29
  %v102 = vpop.f32.mrb[0].mxu0
  %v103 = vadd.f32 %v22, %v102
  %v104 = vpop.f32.mrb[0].mxu0
  %105 = vdwg.mxu0
  %106 = vst.msk [vmem:[%s3] sm:$0xff] %vm24, %v98
  %107 = vst.msk [vmem:[%s3 + $0x8] sm:$0xff] %vm24, %v103
  // Predicated region
  $region14: #{tpu_custom_call.1} parent=0 // pred_check
    _
  $region15: #{tpu_custom_call.1} parent=0 // pred_check_branch
    %109 = sbr.rel (0) target = $region17
  $region16: #{tpu_custom_call.1} parent=0 // pred_region
    _
  $region17: #{tpu_custom_call.1} parent=0 // pred_fallthru
    _
  // Predicated region
  $region18: #{tpu_custom_call.1} parent=0 // pred_check
    _
  $region19: #{tpu_custom_call.1} parent=0 // pred_check_branch
    %111 = sbr.rel (0) target = $region21
  $region20: #{tpu_custom_call.1} parent=0 // pred_region
    _
  $region21: #{tpu_custom_call.1} parent=0 // pred_fallthru
    _

</llo_original>
